<compile_context>
chip_gen: v6e
topology: v6e:2x2x1
jax: 0.10.0
libtpu: 0.0.40
codegen_flags: <defaults>
</compile_context>

<pallas_src>
import math
from functools import partial

import jax
import jax.numpy as jnp
from jax.experimental import pallas as pl
from jax.experimental.pallas import tpu as pltpu

_LN_EPS = 1e-5
# 48 MiB: fits v7x's 64 MiB/TC physical VMEM with pipelining headroom; also a
# comfortable explicit limit on v5e/v6e (128 MiB physical, small scoped default).
_VMEM_LIMIT = 48 * 1024 * 1024


def _gelu(x):
    # TODO(synk): nn.GELU() defaults to exact erf GELU; the tanh approximation
    # (EUP tanh path) is used here -- small (~1e-3) systematic deviation.
    c = math.sqrt(2.0 / math.pi)
    return 0.5 * x * (1.0 + jnp.tanh(c * (x + 0.044715 * (x * x * x))))


def _pick_tile(dim, target, align):
    """Largest tile <= target (halving down to `align`) that divides `dim`.
    Falls back to the full dim (always a legal block).
    TODO(synk): for very large non-dividing dims pad + masked tail instead."""
    if dim <= target:
        return dim
    t = target
    while t >= align:
        if dim % t == 0:
            return t
        t //= 2
    return dim


# -------------------- fused LayerNorm + matmul (full-K) ---------------------


def _ln_matmul_kernel(x_ref, g_ref, b_ref, w_ref, bias_ref, o_ref, *,
                      eps, activation):
    # LayerNorm prologue (full contraction dim in this block) -> MXU matmul ->
    # bias / GELU epilogue. LN math is VPU/XLU filler under the MXU.
    x = x_ref[...].astype(jnp.float32)
    mu = jnp.mean(x, axis=-1, keepdims=True)
    xc = x - mu
    var = jnp.mean(xc * xc, axis=-1, keepdims=True)
    xn = xc * jax.lax.rsqrt(var + eps)
    xn = xn * g_ref[...].astype(jnp.float32) + b_ref[...].astype(jnp.float32)
    xn = xn.astype(w_ref.dtype)          # bf16 MXU operands (weights pre-cast)
    y = jnp.dot(xn, w_ref[...], preferred_element_type=jnp.float32)
    y = y + bias_ref[...].astype(jnp.float32)
    if activation == "gelu":
        y = _gelu(y)                      # f32 GELU (v5e has no bf16 VPU/EUP)
    o_ref[...] = y.astype(o_ref.dtype)


def ln_linear(x2d, gamma, beta, w_kn, bias, *, activation=None,
              tm=256, tn=512, eps=_LN_EPS, out_dtype=None):
    """LayerNorm(x) @ w_kn + bias (optional fused GELU), full-K blocks."""
    M, K = x2d.shape
    K2, Nc = w_kn.shape
    assert K == K2
    out_dtype = out_dtype or x2d.dtype
    btm = _pick_tile(M, tm, 8)
    btn = _pick_tile(Nc, tn, 128)
    grid = (M // btm, Nc // btn)

    bytes_accessed = int(M * K * jnp.dtype(x2d.dtype).itemsize
                         + K * Nc * jnp.dtype(w_kn.dtype).itemsize
                         + M * Nc * jnp.dtype(out_dtype).itemsize)
    return pl.pallas_call(
        partial(_ln_matmul_kernel, eps=eps, activation=activation),
        out_shape=jax.ShapeDtypeStruct((M, Nc), out_dtype),
        grid=grid,
        in_specs=[
            pl.BlockSpec((btm, K), lambda i, j: (i, 0)),
            pl.BlockSpec((1, K), lambda i, j: (0, 0)),
            pl.BlockSpec((1, K), lambda i, j: (0, 0)),
            pl.BlockSpec((K, btn), lambda i, j: (0, j)),
            pl.BlockSpec((1, btn), lambda i, j: (0, j)),
        ],
        out_specs=pl.BlockSpec((btm, btn), lambda i, j: (i, j)),
        compiler_params=pltpu.CompilerParams(
            dimension_semantics=("parallel", "parallel"),
            vmem_limit_bytes=_VMEM_LIMIT),
        cost_estimate=pl.CostEstimate(
            flops=2 * M * Nc * K,
            transcendentals=(M * Nc if activation == "gelu" else 0) + M,
            bytes_accessed=bytes_accessed),
    )(x2d, gamma.reshape(1, K), beta.reshape(1, K), w_kn, bias.reshape(1, Nc))


# -------------- linear (bias / gelu / residual fused in epilogue) -----------


def _linear_kernel(*refs, activation, has_residual):
    # Single-pass (full-K) linear: no accumulator scratch, no K grid axis.
    if has_residual:
        x_ref, w_ref, b_ref, r_ref, o_ref = refs
    else:
        x_ref, w_ref, b_ref, o_ref = refs
        r_ref = None
    x = x_ref[...].astype(w_ref.dtype)
    y = jnp.dot(x, w_ref[...], preferred_element_type=jnp.float32)
    y = y + b_ref[...].astype(jnp.float32)
    if activation == "gelu":
        y = _gelu(y)
    if r_ref is not None:
        y = y + r_ref[...].astype(jnp.float32)
    o_ref[...] = y.astype(o_ref.dtype)


def _linear_acc_kernel(*refs, activation, has_residual):
    # K-tiled linear with resident f32 VMEM accumulator (used when K is large).
    if has_residual:
        x_ref, w_ref, b_ref, r_ref, o_ref, acc_ref = refs
    else:
        x_ref, w_ref, b_ref, o_ref, acc_ref = refs
        r_ref = None
    k = pl.program_id(2)

    @pl.when(k == 0)
    def _():
        acc_ref[...] = jnp.zeros_like(acc_ref)

    x = x_ref[...].astype(w_ref.dtype)
    acc_ref[...] += jnp.dot(x, w_ref[...], preferred_element_type=jnp.float32)

    @pl.when(k == pl.num_programs(2) - 1)
    def _():
        y = acc_ref[...] + b_ref[...].astype(jnp.float32)
        if activation == "gelu":
            y = _gelu(y)
        if r_ref is not None:
            y = y + r_ref[...].astype(jnp.float32)
        o_ref[...] = y.astype(o_ref.dtype)


def linear(x2d, w_kn, bias, *, residual=None, activation=None,
           tm=256, tn=512, tk=2048, out_dtype=None):
    """x2d(M,K) @ w_kn(K,N) + bias, optional fused GELU / residual add."""
    M, K = x2d.shape
    K2, Nc = w_kn.shape
    assert K == K2
    if out_dtype is None:
        out_dtype = residual.dtype if residual is not None else x2d.dtype

    btm = _pick_tile(M, tm, 8)
    btn = _pick_tile(Nc, tn, 128)
    btk = _pick_tile(K, tk, 128)
    kt = K // btk
    has_res = residual is not None
    bias2d = bias.reshape(1, Nc)

    bytes_accessed = int(M * K * jnp.dtype(x2d.dtype).itemsize
                         + K * Nc * jnp.dtype(w_kn.dtype).itemsize
                         + M * Nc * jnp.dtype(out_dtype).itemsize
                         + (M * Nc * jnp.dtype(residual.dtype).itemsize
                            if has_res else 0))
    cost = pl.CostEstimate(flops=2 * M * Nc * K,
                           transcendentals=(M * Nc if activation == "gelu" else 0),
                           bytes_accessed=bytes_accessed)

    if kt == 1:  # full-K single pass
        in_specs = [
            pl.BlockSpec((btm, K), lambda i, j: (i, 0)),
            pl.BlockSpec((K, btn), lambda i, j: (0, j)),
            pl.BlockSpec((1, btn), lambda i, j: (0, j)),
        ]
        operands = [x2d, w_kn, bias2d]
        if has_res:
            in_specs.append(pl.BlockSpec((btm, btn), lambda i, j: (i, j)))
            operands.append(residual)
        return pl.pallas_call(
            partial(_linear_kernel, activation=activation, has_residual=has_res),
            out_shape=jax.ShapeDtypeStruct((M, Nc), out_dtype),
            grid=(M // btm, Nc // btn),
            in_specs=in_specs,
            out_specs=pl.BlockSpec((btm, btn), lambda i, j: (i, j)),
            compiler_params=pltpu.CompilerParams(
                dimension_semantics=("parallel", "parallel"),
                vmem_limit_bytes=_VMEM_LIMIT),
            cost_estimate=cost,
        )(*operands)

    in_specs = [
        pl.BlockSpec((btm, btk), lambda i, j, k: (i, k)),
        pl.BlockSpec((btk, btn), lambda i, j, k: (k, j)),
        pl.BlockSpec((1, btn), lambda i, j, k: (0, j)),
    ]
    operands = [x2d, w_kn, bias2d]
    if has_res:
        in_specs.append(pl.BlockSpec((btm, btn), lambda i, j, k: (i, j)))
        operands.append(residual)
    return pl.pallas_call(
        partial(_linear_acc_kernel, activation=activation, has_residual=has_res),
        out_shape=jax.ShapeDtypeStruct((M, Nc), out_dtype),
        grid=(M // btm, Nc // btn, kt),
        in_specs=in_specs,
        out_specs=pl.BlockSpec((btm, btn), lambda i, j, k: (i, j)),
        scratch_shapes=[pltpu.VMEM((btm, btn), jnp.float32)],
        compiler_params=pltpu.CompilerParams(
            dimension_semantics=("parallel", "parallel", "arbitrary"),
            vmem_limit_bytes=_VMEM_LIMIT),
        cost_estimate=cost,
    )(*operands)


# ----------------------------- Attention ------------------------------------


def _attention_kernel(q_ref, k_ref, v_ref, o_ref, o_acc, *, heads, head_dim):
    # One batch element x one lane-aligned group of `heads` heads per grid step.
    # 1/sqrt(head_dim) is pre-folded into in_proj's q slice (prepare_params).
    # TODO(synk): for short seq, batching >=2 batch elements per step would
    # fill the MXU M dimension better.
    for h in range(heads):                                  # static, unrolled
        lo = h * head_dim
        q = q_ref[:, lo:lo + head_dim]
        k = k_ref[:, lo:lo + head_dim]
        v = v_ref[:, lo:lo + head_dim]
        # 'ld,md->lm': contract last dims directly (no materialized k.T),
        # bf16 operands, f32 accumulation.
        s = jax.lax.dot_general(q, k, (((1,), (1,)), ((), ())),
                                preferred_element_type=jnp.float32)
        s = s - jnp.max(s, axis=-1, keepdims=True)
        p = jnp.exp(s)
        p = p / jnp.sum(p, axis=-1, keepdims=True)          # exact divide (f32)
        o_acc[:, lo:lo + head_dim] = jnp.dot(
            p.astype(v.dtype), v, preferred_element_type=jnp.float32)
    # Single lane-dense store (group width W is a multiple of 128 lanes).
    o_ref[...] = o_acc[...].astype(o_ref.dtype)


def multihead_attention(qkv, *, batch, seq, dim, num_heads, out_dtype):
    """qkv: (seq*batch, 3*dim) in token-major (L, N) row order -> (seq*batch, dim)."""
    head_dim = dim // num_heads
    # Smallest head group whose block width is a multiple of 128 lanes.
    G = num_heads
    for g in range(1, num_heads + 1):
        if num_heads % g == 0 and (g * head_dim) % 128 == 0:
            G = g
            break
    W = G * head_dim
    n_groups = num_heads // G
    assert W % 128 == 0, "dim must admit a lane-aligned (x128) head group"

    # Free bitcast view: (L*N, 3C) -> (L, N*3C). Each batch's q/k/v sectors are
    # contiguous, lane-aligned column blocks -> the permutation lives entirely
    # in the index maps (no host transpose, no extra HBM pass).
    qkv_lw = qkv.reshape(seq, batch * 3 * dim)
    ng3 = 3 * n_groups

    out = pl.pallas_call(
        partial(_attention_kernel, heads=G, head_dim=head_dim),
        out_shape=jax.ShapeDtypeStruct((seq, batch * dim), out_dtype),
        grid=(batch, n_groups),
        in_specs=[
            pl.BlockSpec((seq, W), lambda n, g: (0, n * ng3 + g)),
            pl.BlockSpec((seq, W), lambda n, g: (0, n * ng3 + n_groups + g)),
            pl.BlockSpec((seq, W), lambda n, g: (0, n * ng3 + 2 * n_groups + g)),
        ],
        out_specs=pl.BlockSpec((seq, W), lambda n, g: (0, n * n_groups + g)),
        scratch_shapes=[pltpu.VMEM((seq, W), jnp.float32)],
        compiler_params=pltpu.CompilerParams(
            dimension_semantics=("parallel", "parallel"),
            vmem_limit_bytes=_VMEM_LIMIT),
        cost_estimate=pl.CostEstimate(
            flops=4 * batch * num_heads * seq * seq * head_dim,
            transcendentals=batch * num_heads * seq * seq,
            bytes_accessed=int(qkv.size * qkv.dtype.itemsize
                               + seq * batch * dim * jnp.dtype(out_dtype).itemsize)),
    )(qkv_lw, qkv_lw, qkv_lw)
    # Free view back to token-major rows for the out projection.
    return out.reshape(seq * batch, dim)


# ----------------------------- Block forward --------------------------------


def prepare_params(p, num_heads, mxu_dtype=jnp.bfloat16):
    """One-time prep: (out,in)->(K,N) transpose, 1/sqrt(head_dim) folded into
    the q slice of in_proj, weights pre-cast to the MXU dtype (bf16 default)."""
    w_dt = mxu_dtype if mxu_dtype is not None else jnp.float32
    C = p["ln_1_weight"].shape[0]
    head_dim = C // num_heads
    scale = head_dim ** (-0.5)

    in_w = jnp.asarray(p["in_proj_weight"], jnp.float32)       # (3C, C)
    in_b = jnp.asarray(p["in_proj_bias"], jnp.float32)         # (3C,)
    row_scale = jnp.concatenate([jnp.full((C,), scale, jnp.float32),
                                 jnp.ones((2 * C,), jnp.float32)])
    in_w = in_w * row_scale[:, None]
    in_b = in_b * row_scale

    cast = lambda w: jnp.asarray(w, jnp.float32).T.astype(w_dt)
    f32 = lambda a: jnp.asarray(a, jnp.float32)
    return {
        "ln_1_weight": f32(p["ln_1_weight"]), "ln_1_bias": f32(p["ln_1_bias"]),
        "ln_2_weight": f32(p["ln_2_weight"]), "ln_2_bias": f32(p["ln_2_bias"]),
        "in_proj_w_kn": in_w.T.astype(w_dt),                    # (C, 3C)
        "in_proj_bias": in_b,
        "out_proj_w_kn": cast(p["out_proj_weight"]),            # (C, C)
        "out_proj_bias": f32(p["out_proj_bias"]),
        "c_fc_w_kn": cast(p["c_fc_weight"]),                    # (C, 4C)
        "c_fc_bias": f32(p["c_fc_bias"]),
        "c_proj_w_kn": cast(p["c_proj_weight"]),                # (4C, C)
        "c_proj_bias": f32(p["c_proj_bias"]),
    }


def residual_attention_block_forward(x, prepared, num_heads):
    """x: (L, N, C) — mirrors ResidualAttentionBlock.forward, attn_mask=None.
    TODO(synk): attn_mask, dropout, scaled_cosine/scale_heads/LayerScale
    branches are identity/disabled in the default eval config and not built."""
    L, N, C = x.shape
    w_dtype = prepared["in_proj_w_kn"].dtype
    mid_dtype = w_dtype if w_dtype != jnp.float32 else x.dtype

    # Token-major (L*N, C) rows: free reshape of the natural (L, N, C) layout.
    xb = x.reshape(L * N, C)

    # ---- attention branch: LN1 fused into the qkv projection prologue ----
    qkv = ln_linear(xb, prepared["ln_1_weight"], prepared["ln_1_bias"],
                    prepared["in_proj_w_kn"], prepared["in_proj_bias"],
                    out_dtype=mid_dtype)
    ctx = multihead_attention(qkv, batch=N, seq=L, dim=C, num_heads=num_heads,
                              out_dtype=mid_dtype)
    xb = linear(ctx, prepared["out_proj_w_kn"], prepared["out_proj_bias"],
                residual=xb, out_dtype=x.dtype)                 # fused residual

    # ---- MLP branch: LN2 + GELU fused into c_fc, residual fused into c_proj ----
    m = ln_linear(xb, prepared["ln_2_weight"], prepared["ln_2_bias"],
                  prepared["c_fc_w_kn"], prepared["c_fc_bias"],
                  activation="gelu", out_dtype=mid_dtype)
    xb = linear(m, prepared["c_proj_w_kn"], prepared["c_proj_bias"],
                residual=xb, out_dtype=x.dtype)                 # fused residual

    return xb.reshape(L, N, C)


# ----------------------------- Reference (plain JAX) -------------------------


def block_reference(x, p, num_heads, eps=_LN_EPS):
    L, N, C = x.shape
    hd = C // num_heads
    scale = hd ** (-0.5)

    def ln(t, g, b):
        mu = t.mean(-1, keepdims=True)
        var = ((t - mu) ** 2).mean(-1, keepdims=True)
        return (t - mu) / jnp.sqrt(var + eps) * g + b

    h = ln(x, p["ln_1_weight"], p["ln_1_bias"])
    qkv = h @ p["in_proj_weight"].T + p["in_proj_bias"]
    q, k, v = jnp.split(qkv, 3, axis=-1)
    to_h = lambda t: jnp.transpose(t.reshape(L, N * num_heads, hd), (1, 0, 2))
    q, k, v = to_h(q) * scale, to_h(k), to_h(v)
    attn = jax.nn.softmax(jnp.einsum("bld,bmd->blm", q, k), axis=-1)
    o = jnp.einsum("blm,bmd->bld", attn, v)
    o = jnp.transpose(o, (1, 0, 2)).reshape(L, N, C)
    x = x + (o @ p["out_proj_weight"].T + p["out_proj_bias"])
    h2 = ln(x, p["ln_2_weight"], p["ln_2_bias"])
    m = _gelu(h2 @ p["c_fc_weight"].T + p["c_fc_bias"])
    return x + (m @ p["c_proj_weight"].T + p["c_proj_bias"])


# ----------------------------- main ------------------------------------------


if __name__ == "__main__":
    L, N, C = 8, 2, 128          # small, TPU-friendly (head group = 128 lanes)
    num_heads = 4
    head_dim = C // num_heads
    mlp_width = 4 * C
    scale = head_dim ** (-0.5)

    key = jax.random.PRNGKey(0)
    ks = jax.random.split(key, 8)
    x = jax.random.normal(ks[0], (L, N, C), jnp.float32)

    b_attn = 1.0 / math.sqrt(C)
    b_proj = 1.0 / math.sqrt(mlp_width)
    params = {
        "ln_1_weight": jnp.ones((C,), jnp.float32),
        "ln_1_bias": jnp.zeros((C,), jnp.float32),
        "ln_2_weight": jnp.ones((C,), jnp.float32),
        "ln_2_bias": jnp.zeros((C,), jnp.float32),
        "in_proj_weight": jax.random.normal(ks[1], (3 * C, C), jnp.float32) * scale,
        "in_proj_bias": jnp.zeros((3 * C,), jnp.float32),
        "out_proj_weight": jax.random.uniform(ks[2], (C, C), jnp.float32, -b_attn, b_attn),
        "out_proj_bias": jax.random.uniform(ks[3], (C,), jnp.float32, -b_attn, b_attn),
        "c_fc_weight": jax.random.uniform(ks[4], (mlp_width, C), jnp.float32, -b_attn, b_attn),
        "c_fc_bias": jax.random.uniform(ks[5], (mlp_width,), jnp.float32, -b_attn, b_attn),
        "c_proj_weight": jax.random.uniform(ks[6], (C, mlp_width), jnp.float32, -b_proj, b_proj),
        "c_proj_bias": jax.random.uniform(ks[7], (C,), jnp.float32, -b_proj, b_proj),
    }

    ref = block_reference(x, params, num_heads)

    # 1) f32 weights: tight numerical validation of the fused kernel pipeline.
    prep_f32 = prepare_params(params, num_heads, mxu_dtype=None)
    out_f32 = jax.block_until_ready(
        residual_attention_block_forward(x, prep_f32, num_heads))
    assert out_f32.shape == (L, N, C)
    err32 = float(jnp.max(jnp.abs(out_f32 - ref)))
    assert jnp.allclose(out_f32, ref, atol=2e-3, rtol=2e-3), \
        f"f32 mismatch vs reference, max|diff|={err32}"

    # 2) bf16 MXU operands (the fast path): tolerance accounts for bf16 rounding.
    prep_bf16 = prepare_params(params, num_heads, mxu_dtype=jnp.bfloat16)
    out_bf16 = jax.block_until_ready(
        residual_attention_block_forward(x, prep_bf16, num_heads))
    err16 = float(jnp.max(jnp.abs(out_bf16 - ref)))
    assert jnp.allclose(out_bf16, ref, atol=1e-1, rtol=1e-1), \
        f"bf16 mismatch vs reference, max|diff|={err16}"

    print("KERNEL_OK")
</pallas_src>

<mosaic_0001>
module attributes {stable_mosaic.version = 11 : i64} {
  func.func @_ln_matmul_kernel(%arg0: i32, %arg1: i32, %arg2: memref<16x128xf32, #tpu.memory_space<vmem>>, %arg3: memref<1x128xf32, #tpu.memory_space<vmem>>, %arg4: memref<1x128xf32, #tpu.memory_space<vmem>>, %arg5: memref<128x384xf32, #tpu.memory_space<vmem>>, %arg6: memref<1x384xf32, #tpu.memory_space<vmem>>, %arg7: memref<16x384xf32, #tpu.memory_space<vmem>>) attributes {dimension_semantics = [#tpu.dimension_semantics<parallel>, #tpu.dimension_semantics<parallel>], iteration_bounds = array<i64: 1, 1>, scalar_prefetch = 0 : i64, scratch_operands = 0 : i64, tpu.core_type = #tpu.core_type<tc>, window_params = [{transform_indices = @transform_0, window_bounds = array<i64: 16, 128>}, {pipeline_mode = #tpu.pipeline_mode<synchronous>, transform_indices = @transform_1, window_bounds = array<i64: 1, 128>}, {pipeline_mode = #tpu.pipeline_mode<synchronous>, transform_indices = @transform_2, window_bounds = array<i64: 1, 128>}, {transform_indices = @transform_3, window_bounds = array<i64: 128, 384>}, {transform_indices = @transform_4, window_bounds = array<i64: 1, 384>}, {transform_indices = @transform_5, window_bounds = array<i64: 16, 384>}]} {
    %c0 = arith.constant 0 : index
    %c0_0 = arith.constant 0 : index
    %0 = vector.load %arg2[%c0, %c0_0] : memref<16x128xf32, #tpu.memory_space<vmem>>, vector<16x128xf32>
    %cst = arith.constant dense<0.000000e+00> : vector<16xf32>
    %1 = vector.multi_reduction <add>, %0, %cst [1] : vector<16x128xf32> to vector<16xf32>
    %2 = vector.shape_cast %1 : vector<16xf32> to vector<16x1xf32>
    %cst_1 = arith.constant 1.280000e+02 : f32
    %3 = vector.broadcast %cst_1 : f32 to vector<16x1xf32>
    %4 = arith.divf %2, %3 : vector<16x1xf32>
    %5 = vector.broadcast %4 : vector<16x1xf32> to vector<16x128xf32>
    %6 = arith.subf %0, %5 : vector<16x128xf32>
    %7 = arith.mulf %6, %6 : vector<16x128xf32>
    %cst_2 = arith.constant dense<0.000000e+00> : vector<16xf32>
    %8 = vector.multi_reduction <add>, %7, %cst_2 [1] : vector<16x128xf32> to vector<16xf32>
    %9 = vector.shape_cast %8 : vector<16xf32> to vector<16x1xf32>
    %cst_3 = arith.constant 1.280000e+02 : f32
    %10 = vector.broadcast %cst_3 : f32 to vector<16x1xf32>
    %11 = arith.divf %9, %10 : vector<16x1xf32>
    %cst_4 = arith.constant 9.99999974E-6 : f32
    %12 = vector.broadcast %cst_4 : f32 to vector<16x1xf32>
    %13 = arith.addf %11, %12 : vector<16x1xf32>
    %14 = math.rsqrt %13 : vector<16x1xf32>
    %15 = vector.broadcast %14 : vector<16x1xf32> to vector<16x128xf32>
    %16 = arith.mulf %6, %15 : vector<16x128xf32>
    %c0_5 = arith.constant 0 : index
    %c0_6 = arith.constant 0 : index
    %17 = vector.load %arg3[%c0_5, %c0_6] : memref<1x128xf32, #tpu.memory_space<vmem>>, vector<1x128xf32>
    %18 = vector.broadcast %17 : vector<1x128xf32> to vector<16x128xf32>
    %19 = arith.mulf %16, %18 : vector<16x128xf32>
    %c0_7 = arith.constant 0 : index
    %c0_8 = arith.constant 0 : index
    %20 = vector.load %arg4[%c0_7, %c0_8] : memref<1x128xf32, #tpu.memory_space<vmem>>, vector<1x128xf32>
    %21 = vector.broadcast %20 : vector<1x128xf32> to vector<16x128xf32>
    %22 = arith.addf %19, %21 : vector<16x128xf32>
    %c0_9 = arith.constant 0 : index
    %c0_10 = arith.constant 0 : index
    %23 = vector.load %arg5[%c0_9, %c0_10] : memref<128x384xf32, #tpu.memory_space<vmem>>, vector<128x384xf32>
    %cst_11 = arith.constant dense<0.000000e+00> : vector<16x384xf32>
    %24 = tpu.matmul %22, %23, %cst_11 {dimension_numbers = #tpu.dot_dimension_numbers<[1], [0], [0], [1], [0, 0, 1, 1], [], []>} : vector<16x128xf32>, vector<128x384xf32>, vector<16x384xf32> -> vector<16x384xf32>
    %c0_12 = arith.constant 0 : index
    %c0_13 = arith.constant 0 : index
    %25 = vector.load %arg6[%c0_12, %c0_13] : memref<1x384xf32, #tpu.memory_space<vmem>>, vector<1x384xf32>
    %26 = vector.broadcast %25 : vector<1x384xf32> to vector<16x384xf32>
    %27 = arith.addf %24, %26 : vector<16x384xf32>
    %c0_14 = arith.constant 0 : index
    %c0_15 = arith.constant 0 : index
    %28 = vector.load %arg7[%c0_14, %c0_15] : memref<16x384xf32, #tpu.memory_space<vmem>>, vector<16x384xf32>
    tpu.vector_store %arg7[%c0_14, %c0_15], %27 {strides = array<i32>} : memref<16x384xf32, #tpu.memory_space<vmem>>, vector<16x384xf32>,
    return
  }
  func.func @transform_0(%arg0: i32, %arg1: i32) -> (i32, i32) {
    %c0_i32 = arith.constant 0 : i32
    %c0_i32_0 = arith.constant 0 : i32
    return %arg0, %c0_i32 : i32, i32
  }
  func.func @transform_1(%arg0: i32, %arg1: i32) -> (i32, i32) {
    %c0_i32 = arith.constant 0 : i32
    %c0_i32_0 = arith.constant 0 : i32
    %c0_i32_1 = arith.constant 0 : i32
    return %c0_i32, %c0_i32_0 : i32, i32
  }
  func.func @transform_2(%arg0: i32, %arg1: i32) -> (i32, i32) {
    %c0_i32 = arith.constant 0 : i32
    %c0_i32_0 = arith.constant 0 : i32
    %c0_i32_1 = arith.constant 0 : i32
    return %c0_i32, %c0_i32_0 : i32, i32
  }
  func.func @transform_3(%arg0: i32, %arg1: i32) -> (i32, i32) {
    %c0_i32 = arith.constant 0 : i32
    %c0_i32_0 = arith.constant 0 : i32
    return %c0_i32, %arg1 : i32, i32
  }
  func.func @transform_4(%arg0: i32, %arg1: i32) -> (i32, i32) {
    %c0_i32 = arith.constant 0 : i32
    %c0_i32_0 = arith.constant 0 : i32
    return %c0_i32, %arg1 : i32, i32
  }
  func.func @transform_5(%arg0: i32, %arg1: i32) -> (i32, i32) {
    %c0_i32 = arith.constant 0 : i32
    return %arg0, %arg1 : i32, i32
  }
}

</mosaic_0001>

<llo_original>
// kernel: tpu_custom_call.1
$region0: #{tpu_custom_call.1}
  #allocation0 [shape = 'u32[]', space=smem, size = 0x4, offset = 0x4, fixed_abs, tag = 'smem constant byte address 0x4 - core index']
  #allocation1 [shape = 'u32[144,128]{1,0:T(1,128)}', space=vmem, size = 0x12000, scoped, tag = 'internal scratch']
  %s0 = inlined_call_operand.hbm [shape: f32[16,128], index: 0, kind: input, shape index: {}]
  %s1 = inlined_call_operand.vmem [shape: f32[1,128], index: 1, kind: input, shape index: {}]
  %s2 = inlined_call_operand.vmem [shape: f32[1,128], index: 2, kind: input, shape index: {}]
  %s3 = inlined_call_operand.hbm [shape: f32[128,384], index: 3, kind: input, shape index: {}]
  %s4 = inlined_call_operand.vmem [shape: f32[1,384], index: 4, kind: input, shape index: {}]
  %s5 = inlined_call_operand.hbm [shape: f32[16,384], index: 5, kind: output, shape index: {}]
  %s6 = sld [smem:[#allocation0]]
  $region38: #{tpu_custom_call.1} parent=0
    _
  %s8 = ssub.s32 1, %s6
  %s9 = scalar_select 0, %s8, %s6
  $region1: #{tpu_custom_call.1} parent=0
    #allocation2 [shape = 'u8[8192]{0}', space=vmem, size = 0x2000, scoped, tag = 'input window, operand 0, single buffered']
    #allocation3 [shape = 's32[1]{0}', space=sflag, size = 0x4, scoped, tag = 'scoped memory for tpu_custom_call.1']
    #allocation4 [shape = 's32[1]{0}', space=sflag, size = 0x4, scoped, tag = 'scoped memory for tpu_custom_call.1']
    #allocation5 [shape = 'u8[196608]{0}', space=vmem, size = 0x30000, scoped, tag = 'input window, operand 3, single buffered']
    #allocation6 [shape = 's32[1]{0}', space=sflag, size = 0x4, scoped, tag = 'scoped memory for tpu_custom_call.1']
    #allocation7 [shape = 'u8[24576]{0}', space=vmem, size = 0x6000, scoped, tag = 'output window, operand 0, single buffered']
    %10 = vsyncpa [#allocation3], 0
    %11 = vsyncpa [#allocation6], 0
    %12 = vsyncpa [#allocation4], 0
    // Predicated region
    $region2: #{tpu_custom_call.1} parent=1 // pred_check
      _
    $region3: #{tpu_custom_call.1} parent=1 // pred_check_branch
      %14 = sbr.rel (0) target = $region5
    $region4: #{tpu_custom_call.1} parent=1 // pred_region
      %s16 = ssub.s32 256, 256
      %17 = vsyncadd [#allocation3], %s16
      %s18 = sshll.u32 [#allocation2], 4
      %s19 = int_to_ptr.vmem [resolvable:$true] %s18
      %24 = dma.hbm_to_vmem [thread:$0]  %s0, 256, %s19, [#allocation3], 128, 128, 8
    $region5: #{tpu_custom_call.1} parent=1 // pred_fallthru
      _
    // Predicated region
    $region6: #{tpu_custom_call.1} parent=1 // pred_check
      _
    $region7: #{tpu_custom_call.1} parent=1 // pred_check_branch
      %26 = sbr.rel (0) target = $region9
    $region8: #{tpu_custom_call.1} parent=1 // pred_region
      _
    $region9: #{tpu_custom_call.1} parent=1 // pred_fallthru
      _
    // Predicated region
    $region10: #{tpu_custom_call.1} parent=1 // pred_check
      _
    $region11: #{tpu_custom_call.1} parent=1 // pred_check_branch
      %28 = sbr.rel (0) target = $region13
    $region12: #{tpu_custom_call.1} parent=1 // pred_region
      _
    $region13: #{tpu_custom_call.1} parent=1 // pred_fallthru
      _
    // Predicated region
    $region14: #{tpu_custom_call.1} parent=1 // pred_check
      _
    $region15: #{tpu_custom_call.1} parent=1 // pred_check_branch
      %30 = sbr.rel (0) target = $region17
    $region16: #{tpu_custom_call.1} parent=1 // pred_region
      %s32 = ssub.s32 6144, 6144
      %33 = vsyncadd [#allocation6], %s32
      %s34 = sshll.u32 [#allocation5], 4
      %s35 = int_to_ptr.vmem [resolvable:$true] %s34
      %40 = dma.hbm_to_vmem [thread:$0]  %s3, 6144, %s35, [#allocation6], 384, 384, 24
    $region17: #{tpu_custom_call.1} parent=1 // pred_fallthru
      _
    // Predicated region
    $region18: #{tpu_custom_call.1} parent=1 // pred_check
      _
    $region19: #{tpu_custom_call.1} parent=1 // pred_check_branch
      %42 = sbr.rel (0) target = $region21
    $region20: #{tpu_custom_call.1} parent=1 // pred_region
      _
    $region21: #{tpu_custom_call.1} parent=1 // pred_fallthru
      _
    // Predicated region
    $region22: #{tpu_custom_call.1} parent=1 // pred_check
      _
    $region23: #{tpu_custom_call.1} parent=1 // pred_check_branch
      %44 = sbr.rel (0) target = $region25
    $region24: #{tpu_custom_call.1} parent=1 // pred_region
      %45 = dma.done [#allocation3], 256
    $region25: #{tpu_custom_call.1} parent=1 // pred_fallthru
      _
    // Predicated region
    $region26: #{tpu_custom_call.1} parent=1 // pred_check
      _
    $region27: #{tpu_custom_call.1} parent=1 // pred_check_branch
      %47 = sbr.rel (0) target = $region29
    $region28: #{tpu_custom_call.1} parent=1 // pred_region
      %48 = dma.done [#allocation6], 6144
    $region29: #{tpu_custom_call.1} parent=1 // pred_fallthru
      _
    %v49 = vld [vmem:[#allocation2] sm:$0xff]
    %v50 = vld [vmem:[#allocation2 + $0x8] sm:$0xff]
    %51 = vadd.xlane.f32.xlu0 %v49
    %v52 = vpop.xlane.xlu0 %51
    %53 = vadd.xlane.f32.xlu0 %v50
    %v54 = vpop.xlane.xlu0 %53
    %v55 = vrcp.pop 128.0
    %v56 = vmul.f32 %v52, %v55
    %v57 = vmul.f32 %v54, %v55
    %v58 = vsub.f32 %v49, %v56
    %v59 = vsub.f32 %v50, %v57
    %v60 = vmul.f32 %v58, %v58
    %v61 = vmul.f32 %v59, %v59
    %62 = vadd.xlane.f32.xlu0 %v60
    %v63 = vpop.xlane.xlu0 %62
    %64 = vadd.xlane.f32.xlu0 %v61
    %v65 = vpop.xlane.xlu0 %64
    %v66 = vmul.f32 %v63, %v55
    %v67 = vmul.f32 %v65, %v55
    %v68 = vadd.f32 %v66, 1e-05
    %v69 = vadd.f32 %v67, 1e-05
    %v70 = vrsqrt.pop %v68
    %v71 = vrsqrt.pop %v69
    %v72 = vmul.f32 %v58, %v70
    %v73 = vmul.f32 %v59, %v71
    %v74 = vld [vmem:[%s1] sm:$0x1]
    %v76 = vlaneseq
    %v77 = vshrl.u32 %v76, 7
    %v78 = vsub.s32 0, %v77
    %v79 = vrot.slane %v74, %v78
    %v81 = vmul.f32 %v72, %v79
    %v82 = vmul.f32 %v73, %v79
    %v83 = vld [vmem:[%s2] sm:$0x1]
    %v85 = vlaneseq
    %v86 = vshrl.u32 %v85, 7
    %v87 = vsub.s32 0, %v86
    %v88 = vrot.slane %v83, %v87
    %v90 = vadd.f32 %v81, %v88
    %v91 = vadd.f32 %v82, %v88
    %v92 = vld [vmem:[#allocation5] sm:$0xff]
    %v93 = vld [vmem:[#allocation5 + $0x8] sm:$0xff]
    %v94 = vld [vmem:[#allocation5 + $0x10] sm:$0xff]
    %v95 = vld [vmem:[#allocation5 + $0x18] sm:$0xff]
    %v96 = vld [vmem:[#allocation5 + $0x20] sm:$0xff]
    %v97 = vld [vmem:[#allocation5 + $0x28] sm:$0xff]
    %v98 = vld [vmem:[#allocation5 + $0x30] sm:$0xff]
    %v99 = vld [vmem:[#allocation5 + $0x38] sm:$0xff]
    %v100 = vld [vmem:[#allocation5 + $0x40] sm:$0xff]
    %v101 = vld [vmem:[#allocation5 + $0x48] sm:$0xff]
    %v102 = vld [vmem:[#allocation5 + $0x50] sm:$0xff]
    %v103 = vld [vmem:[#allocation5 + $0x58] sm:$0xff]
    %v104 = vld [vmem:[#allocation5 + $0x60] sm:$0xff]
    %v105 = vld [vmem:[#allocation5 + $0x68] sm:$0xff]
    %v106 = vld [vmem:[#allocation5 + $0x70] sm:$0xff]
    %v107 = vld [vmem:[#allocation5 + $0x78] sm:$0xff]
    %v108 = vld [vmem:[#allocation5 + $0x80] sm:$0xff]
    %v109 = vld [vmem:[#allocation5 + $0x88] sm:$0xff]
    %v110 = vld [vmem:[#allocation5 + $0x90] sm:$0xff]
    %v111 = vld [vmem:[#allocation5 + $0x98] sm:$0xff]
    %v112 = vld [vmem:[#allocation5 + $0xa0] sm:$0xff]
    %v113 = vld [vmem:[#allocation5 + $0xa8] sm:$0xff]
    %v114 = vld [vmem:[#allocation5 + $0xb0] sm:$0xff]
    %v115 = vld [vmem:[#allocation5 + $0xb8] sm:$0xff]
    %v116 = vld [vmem:[#allocation5 + $0xc0] sm:$0xff]
    %v117 = vld [vmem:[#allocation5 + $0xc8] sm:$0xff]
    %v118 = vld [vmem:[#allocation5 + $0xd0] sm:$0xff]
    %v119 = vld [vmem:[#allocation5 + $0xd8] sm:$0xff]
    %v120 = vld [vmem:[#allocation5 + $0xe0] sm:$0xff]
    %v121 = vld [vmem:[#allocation5 + $0xe8] sm:$0xff]
    %v122 = vld [vmem:[#allocation5 + $0xf0] sm:$0xff]
    %v123 = vld [vmem:[#allocation5 + $0xf8] sm:$0xff]
    %v124 = vld [vmem:[#allocation5 + $0x100] sm:$0xff]
    %v125 = vld [vmem:[#allocation5 + $0x108] sm:$0xff]
    %v126 = vld [vmem:[#allocation5 + $0x110] sm:$0xff]
    %v127 = vld [vmem:[#allocation5 + $0x118] sm:$0xff]
    %v128 = vld [vmem:[#allocation5 + $0x120] sm:$0xff]
    %v129 = vld [vmem:[#allocation5 + $0x128] sm:$0xff]
    %v130 = vld [vmem:[#allocation5 + $0x130] sm:$0xff]
    %v131 = vld [vmem:[#allocation5 + $0x138] sm:$0xff]
    %v132 = vld [vmem:[#allocation5 + $0x140] sm:$0xff]
    %v133 = vld [vmem:[#allocation5 + $0x148] sm:$0xff]
    %v134 = vld [vmem:[#allocation5 + $0x150] sm:$0xff]
    %v135 = vld [vmem:[#allocation5 + $0x158] sm:$0xff]
    %v136 = vld [vmem:[#allocation5 + $0x160] sm:$0xff]
    %v137 = vld [vmem:[#allocation5 + $0x168] sm:$0xff]
    %v138 = vld [vmem:[#allocation5 + $0x170] sm:$0xff]
    %v139 = vld [vmem:[#allocation5 + $0x178] sm:$0xff]
    %v140 = vld [vmem:[%s4] sm:$0x7]
    %v142 = vlaneseq
    %v143 = vshrl.u32 %v142, 7
    %v144 = vsub.s32 0, %v143
    %v145 = vrot.slane %v140, %v144
    %v146 = vlaneseq
    %v147 = vshrl.u32 %v146, 7
    %v148 = vsub.s32 1, %v147
    %v149 = vrot.slane %v140, %v148
    %v150 = vlaneseq
    %v151 = vshrl.u32 %v150, 7
    %v152 = vsub.s32 2, %v151
    %v153 = vrot.slane %v140, %v152
    %157 = vmatprep.subr.mxu0 %v138
    %158 = vmatpush1.msra.mxu0 %v137
    %159 = vmatprep.subr.mxu0 %v135
    %160 = vmatpush1.msra.mxu0 %v134
    %161 = vmatprep.subr.mxu0 %v132
    %162 = vmatpush1.msra.mxu0 %v131
    %163 = vmatprep.subr.mxu0 %v129
    %164 = vmatpush1.msra.mxu0 %v128
    %165 = vmatprep.subr.mxu0 %v126
    %166 = vmatpush1.msra.mxu0 %v125
    %167 = vmatprep.subr.mxu0 %v123
    %168 = vmatpush1.msra.mxu0 %v122
    %169 = vmatprep.subr.mxu0 %v120
    %170 = vmatpush1.msra.mxu0 %v119
    %171 = vmatprep.subr.mxu0 %v117
    %172 = vmatpush1.msra.mxu0 %v116
    %173 = vmatprep.subr.mxu0 %v114
    %174 = vmatpush1.msra.mxu0 %v113
    %175 = vmatprep.subr.mxu0 %v111
    %176 = vmatpush1.msra.mxu0 %v110
    %177 = vmatprep.subr.mxu0 %v108
    %178 = vmatpush1.msra.mxu0 %v107
    %179 = vmatprep.subr.mxu0 %v105
    %180 = vmatpush1.msra.mxu0 %v104
    %181 = vmatprep.subr.mxu0 %v102
    %182 = vmatpush1.msra.mxu0 %v101
    %183 = vmatprep.subr.mxu0 %v99
    %184 = vmatpush1.msra.mxu0 %v98
    %185 = vmatprep.subr.mxu0 %v96
    %186 = vmatpush1.msra.mxu0 %v95
    %187 = vmatprep.subr.mxu0 %v93
    %188 = vmatpush1.msra.mxu0 %v92
    %189 = vmatprep.subr.mxu0 0.0
    %190 = vmatpush2.msra.mxu0 0.0
    %191 = vmatprep.subr.mxu0 0.0
    %192 = vmatpush2.msra.mxu0 0.0
    %193 = vmatprep.subr.mxu0 0.0
    %194 = vmatpush2.msra.mxu0 0.0
    %195 = vmatprep.subr.mxu0 0.0
    %196 = vmatpush2.msra.mxu0 0.0
    %197 = vmatprep.subr.mxu0 0.0
    %198 = vmatpush2.msra.mxu0 0.0
    %199 = vmatprep.subr.mxu0 0.0
    %200 = vmatpush2.msra.mxu0 0.0
    %201 = vmatprep.subr.mxu0 0.0
    %202 = vmatpush2.msra.mxu0 0.0
    %203 = vmatprep.subr.mxu0 0.0
    %204 = vmatpush2.msra.mxu0 0.0
    %205 = vmatprep.subr.mxu0 0.0
    %206 = vmatpush2.msra.mxu0 0.0
    %207 = vmatprep.subr.mxu0 0.0
    %208 = vmatpush2.msra.mxu0 0.0
    %209 = vmatprep.subr.mxu0 0.0
    %210 = vmatpush2.msra.mxu0 0.0
    %211 = vmatprep.subr.mxu0 0.0
    %212 = vmatpush2.msra.mxu0 0.0
    %213 = vmatprep.subr.mxu0 0.0
    %214 = vmatpush2.msra.mxu0 0.0
    %215 = vmatprep.subr.mxu0 0.0
    %216 = vmatpush2.msra.mxu0 0.0
    %217 = vmatprep.subr.mxu0 0.0
    %218 = vmatpush2.msra.mxu0 0.0
    %219 = vmatprep.subr.mxu0 0.0
    %220 = vmatpush2.msra.mxu0 0.0
    %221 = vmatprep.mubr.f32.mxu0 0.0
    %222 = vmatmul.mubr.f32.gmra.mxu0 %v90
    %v223 = vpop.f32.mrf.mxu0
    %v224 = vadd.f32 %v145, %v223
    %v225 = vpop.f32.mrf.mxu0
    %v226 = vadd.f32 %v149, %v225
    %227 = vmatprep.mubr.f32.mxu0 0.0
    %228 = vmatmul.mubr.f32.gmra.mxu0 %v91
    %v229 = vpop.f32.mrf.mxu0
    %v230 = vadd.f32 %v145, %v229
    %v231 = vpop.f32.mrf.mxu0
    %v232 = vadd.f32 %v149, %v231
    %233 = vdwg.mxu0
    %234 = vmatprep.subr.mxu0 0.0
    %235 = vmatpush1.msra.mxu0 %v139
    %236 = vmatprep.subr.mxu0 0.0
    %237 = vmatpush1.msra.mxu0 %v136
    %238 = vmatprep.subr.mxu0 0.0
    %239 = vmatpush1.msra.mxu0 %v133
    %240 = vmatprep.subr.mxu0 0.0
    %241 = vmatpush1.msra.mxu0 %v130
    %242 = vmatprep.subr.mxu0 0.0
    %243 = vmatpush1.msra.mxu0 %v127
    %244 = vmatprep.subr.mxu0 0.0
    %245 = vmatpush1.msra.mxu0 %v124
    %246 = vmatprep.subr.mxu0 0.0
    %247 = vmatpush1.msra.mxu0 %v121
    %248 = vmatprep.subr.mxu0 0.0
    %249 = vmatpush1.msra.mxu0 %v118
    %250 = vmatprep.subr.mxu0 0.0
    %251 = vmatpush1.msra.mxu0 %v115
    %252 = vmatprep.subr.mxu0 0.0
    %253 = vmatpush1.msra.mxu0 %v112
    %254 = vmatprep.subr.mxu0 0.0
    %255 = vmatpush1.msra.mxu0 %v109
    %256 = vmatprep.subr.mxu0 0.0
    %257 = vmatpush1.msra.mxu0 %v106
    %258 = vmatprep.subr.mxu0 0.0
    %259 = vmatpush1.msra.mxu0 %v103
    %260 = vmatprep.subr.mxu0 0.0
    %261 = vmatpush1.msra.mxu0 %v100
    %262 = vmatprep.subr.mxu0 0.0
    %263 = vmatpush1.msra.mxu0 %v97
    %264 = vmatprep.subr.mxu0 0.0
    %265 = vmatpush1.msra.mxu0 %v94
    %266 = vmatprep.subr.mxu0 0.0
    %267 = vmatpush2.msra.mxu0 0.0
    %268 = vmatprep.subr.mxu0 0.0
    %269 = vmatpush2.msra.mxu0 0.0
    %270 = vmatprep.subr.mxu0 0.0
    %271 = vmatpush2.msra.mxu0 0.0
    %272 = vmatprep.subr.mxu0 0.0
    %273 = vmatpush2.msra.mxu0 0.0
    %274 = vmatprep.subr.mxu0 0.0
    %275 = vmatpush2.msra.mxu0 0.0
    %276 = vmatprep.subr.mxu0 0.0
    %277 = vmatpush2.msra.mxu0 0.0
    %278 = vmatprep.subr.mxu0 0.0
    %279 = vmatpush2.msra.mxu0 0.0
    %280 = vmatprep.subr.mxu0 0.0
    %281 = vmatpush2.msra.mxu0 0.0
    %282 = vmatprep.subr.mxu0 0.0
    %283 = vmatpush2.msra.mxu0 0.0
    %284 = vmatprep.subr.mxu0 0.0
    %285 = vmatpush2.msra.mxu0 0.0
    %286 = vmatprep.subr.mxu0 0.0
    %287 = vmatpush2.msra.mxu0 0.0
    %288 = vmatprep.subr.mxu0 0.0
    %289 = vmatpush2.msra.mxu0 0.0
    %290 = vmatprep.subr.mxu0 0.0
    %291 = vmatpush2.msra.mxu0 0.0
    %292 = vmatprep.subr.mxu0 0.0
    %293 = vmatpush2.msra.mxu0 0.0
    %294 = vmatprep.subr.mxu0 0.0
    %295 = vmatpush2.msra.mxu0 0.0
    %296 = vmatprep.subr.mxu0 0.0
    %297 = vmatpush2.msra.mxu0 0.0
    %298 = vmatprep.mubr.f32.mxu0 0.0
    %299 = vmatmul.mubr.f32.gmra.mxu0 %v90
    %v300 = vpop.f32.mrf.mxu0
    %v301 = vadd.f32 %v153, %v300
    %v302 = vpop.f32.mrf.mxu0
    %303 = vmatprep.mubr.f32.mxu0 0.0
    %304 = vmatmul.mubr.f32.gmra.mxu0 %v91
    %v305 = vpop.f32.mrf.mxu0
    %v306 = vadd.f32 %v153, %v305
    %v307 = vpop.f32.mrf.mxu0
    %308 = vdwg.mxu0
    %309 = vst [vmem:[#allocation7] sm:$0xff] %v224
    %310 = vst [vmem:[#allocation7 + $0x8] sm:$0xff] %v226
    %311 = vst [vmem:[#allocation7 + $0x10] sm:$0xff] %v301
    %312 = vst [vmem:[#allocation7 + $0x18] sm:$0xff] %v230
    %313 = vst [vmem:[#allocation7 + $0x20] sm:$0xff] %v232
    %314 = vst [vmem:[#allocation7 + $0x28] sm:$0xff] %v306
    // Predicated region
    $region30: #{tpu_custom_call.1} parent=1 // pred_check
      _
    $region31: #{tpu_custom_call.1} parent=1 // pred_check_branch
      %316 = sbr.rel (0) target = $region33
    $region32: #{tpu_custom_call.1} parent=1 // pred_region
      %s318 = ssub.s32 768, 768
      %319 = vsyncadd [#allocation4], %s318
      %s320 = sshll.u32 [#allocation7], 4
      %s321 = int_to_ptr.vmem [resolvable:$true] %s320
      %326 = dma.vmem_to_hbm [thread:$0]  %s321, 768, %s5, [#allocation4], 384, 384, 24
    $region33: #{tpu_custom_call.1} parent=1 // pred_fallthru
      _
    // Predicated region
    $region34: #{tpu_custom_call.1} parent=1 // pred_check
      _
    $region35: #{tpu_custom_call.1} parent=1 // pred_check_branch
      %328 = sbr.rel (0) target = $region37
    $region36: #{tpu_custom_call.1} parent=1 // pred_region
      %329 = dma.done [#allocation4], 768
    $region37: #{tpu_custom_call.1} parent=1 // pred_fallthru
      _
    %330 = vsyncpa [#allocation3], 1
    %331 = vsyncpa [#allocation6], 1
    %332 = vsyncpa [#allocation4], 1

</llo_original>
